<compile_context>
chip_gen: v6e
topology: v6e:2x2x1
jax: 0.10.0
libtpu: 0.0.40
codegen_flags: <defaults>
</compile_context>

<pallas_src>
import math

import numpy as np

import jax
import jax.numpy as jnp
from jax.experimental import pallas as pl
from jax.experimental.pallas import tpu as pltpu

DROPOUT_P = 0.1

# Hash constants (lowbias32 / golden-ratio), held as numpy uint32 scalars so
# all in-kernel integer arithmetic stays in uint32 (logical shifts, wrapping
# multiply) on both the Mosaic and interpret paths.
_GOLD = np.uint32(0x9E3779B9)
_M1 = np.uint32(0x7FEB352D)
_M2 = np.uint32(0x846CA68B)
_KEEP_THRESH_24 = np.int32(int(DROPOUT_P * (1 << 24)))  # P(drop) = p to 2^-24


def _pe_dropout_kernel(seed_ref, x_ref, pe_ref, o_ref):
    """One (1, TR, C) tile: out = inverted_dropout(x + pe, p)."""
    s = pl.program_id(0)          # row-tile index (outer grid axis)
    b = pl.program_id(1)          # batch index    (inner grid axis)
    n_s = pl.num_programs(0)

    # Additive positional encoding (pe broadcasts over batch).
    y = x_ref[...].astype(jnp.float32) + pe_ref[...]

    # ---- dropout mask from a counter-based hash PRNG --------------------
    # Globally unique per-element counter across (batch, row-tile, row, col):
    # distinct seq tiles / batch elements never share a random stream.
    _, TR, C = x_ref.shape
    row = jax.lax.broadcasted_iota(jnp.int32, (1, TR, C), 1)
    col = jax.lax.broadcasted_iota(jnp.int32, (1, TR, C), 2)
    base = (b * n_s + s) * TR                       # scalar int32
    flat = (base + row) * C + col                   # (1, TR, C) int32 counter

    h = flat.astype(jnp.uint32) + seed_ref[0].astype(jnp.uint32) * _GOLD
    # lowbias32 avalanche finalizer (xor-shift-mul x2 + xor-shift); all
    # elementwise uint32 VPU ops -- free in this memory-bound kernel.
    h = (h ^ (h >> np.uint32(16))) * _M1
    h = (h ^ (h >> np.uint32(15))) * _M2
    h = h ^ (h >> np.uint32(16))

    r = (h >> np.uint32(8)).astype(jnp.int32)       # uniform in [0, 2^24)
    keep = r >= _KEEP_THRESH_24                     # P(keep) = 1 - p

    scale = jnp.float32(1.0 / (1.0 - DROPOUT_P))
    o_ref[...] = jnp.where(keep, y * scale, jnp.float32(0.0)).astype(o_ref.dtype)


def make_positional_encoding(d_model, max_len=10000):
    """Build the sinusoidal PE buffer exactly as the PyTorch __init__ does."""
    position = jnp.arange(max_len, dtype=jnp.float32)[:, None]           # (L, 1)
    div_term = jnp.exp(
        jnp.arange(0, d_model, 2, dtype=jnp.float32)
        * (-math.log(10000.0) / d_model)
    )                                                                     # (D/2,)
    pe = jnp.zeros((max_len, d_model), dtype=jnp.float32)
    pe = pe.at[:, 0::2].set(jnp.sin(position * div_term))
    pe = pe.at[:, 1::2].set(jnp.cos(position * div_term))
    return pe[None]                                                       # (1, L, D)


def _choose_layout(S, D):
    """Per-batch (R, C) view of the (S, D) slab with lane-dense C if possible."""
    flat = S * D
    if D % 128 == 0:
        return S, D
    if flat % 128 == 0:
        # Elementwise op => any consistent reshape of x/pe/out is valid.
        C = 128
        while C * 2 <= 2048 and flat % (C * 2) == 0:
            C *= 2
        return flat // C, C
    # Fallback for odd shapes: correct, but stores may be lane-masked.
    return S, D


def _choose_row_tile(R, C, target_bytes=1 << 20):
    """Largest row tile TR (divisor of R, %8==0 or ==R) with TR*C*4 <= ~1 MiB."""
    if R * C * 4 <= target_bytes:
        return R                      # small problem: one block per batch elem
    max_tr = max(8, (target_bytes // (C * 4)) // 8 * 8)
    tr = min(max_tr, R)
    tr -= tr % 8
    while tr >= 8:
        if R % tr == 0:
            return tr
        tr -= 8
    return R                          # no nice divisor: fall back to full rows


def positional_encoding_forward(x, pe_full, seed):
    """x: (B, S, D).  pe_full: (1, max_len, D) float32.  seed: python int."""
    B, S, D = x.shape
    pe = pe_full[:, :S, :]                       # same slice as the torch fwd

    R, C = _choose_layout(S, D)
    TR = _choose_row_tile(R, C)

    x_r = x.reshape(B, R, C)
    pe_r = pe.reshape(1, R, C)
    seed_arr = jnp.array([seed], dtype=jnp.int32)

    grid = (R // TR, B)                          # seq tiles OUTER, batch INNER

    grid_spec = pltpu.PrefetchScalarGridSpec(
        num_scalar_prefetch=1,                   # seed lives in SMEM
        grid=grid,
        in_specs=[
            pl.BlockSpec((1, TR, C), lambda s, b, seed_ref: (b, s, 0)),  # x
            pl.BlockSpec((1, TR, C), lambda s, b, seed_ref: (0, s, 0)),  # pe
        ],
        out_specs=pl.BlockSpec((1, TR, C), lambda s, b, seed_ref: (b, s, 0)),
    )

    out = pl.pallas_call(
        _pe_dropout_kernel,
        out_shape=jax.ShapeDtypeStruct((B, R, C), x.dtype),
        grid_spec=grid_spec,
        compiler_params=pltpu.CompilerParams(
            dimension_semantics=("parallel", "parallel"),
        ),
    )(seed_arr, x_r, pe_r)

    return out.reshape(B, S, D)


if __name__ == "__main__":
    B, S, D = 2, 8, 32
    MAX_LEN = 10000

    key = jax.random.PRNGKey(0)
    x = jax.random.normal(key, (B, S, D), dtype=jnp.float32)

    pe_full = make_positional_encoding(D, max_len=MAX_LEN)

    out = positional_encoding_forward(x, pe_full, seed=1234)
    out = jax.block_until_ready(out)
    assert out.shape == (B, S, D)

    # Sanity check: every non-dropped element must equal (x + pe) / (1 - p).
    expected = (x + pe_full[:, :S, :]) / (1.0 - DROPOUT_P)
    kept = out != 0.0
    assert jnp.allclose(jnp.where(kept, out, expected), expected,
                        atol=1e-5, rtol=1e-5), "kept elements mismatch"

    # Dropout actually drops something, and roughly at rate p (loose band).
    drop_frac = 1.0 - float(jnp.mean(kept.astype(jnp.float32)))
    assert 0.0 < drop_frac < 0.4, f"implausible drop fraction {drop_frac}"

    print("KERNEL_OK")
</pallas_src>

<mosaic_0001>
module attributes {stable_mosaic.version = 11 : i64} {
  func.func @_pe_dropout_kernel(%arg0: i32, %arg1: i32, %arg2: memref<1xi32, #tpu.memory_space<smem>>, %arg3: memref<1x1x256xf32, #tpu.memory_space<vmem>>, %arg4: memref<1x1x256xf32, #tpu.memory_space<vmem>>, %arg5: memref<1x1x256xf32, #tpu.memory_space<vmem>>) attributes {dimension_semantics = [#tpu.dimension_semantics<parallel>, #tpu.dimension_semantics<parallel>], iteration_bounds = array<i64: 1, 2>, scalar_prefetch = 1 : i64, scratch_operands = 0 : i64, tpu.core_type = #tpu.core_type<tc>, window_params = [{transform_indices = @transform_0, window_bounds = array<i64: 1, 1, 256>}, {transform_indices = @transform_1, window_bounds = array<i64: 1, 1, 256>}, {transform_indices = @transform_2, window_bounds = array<i64: 1, 1, 256>}]} {
    %c0 = arith.constant 0 : index
    %c0_0 = arith.constant 0 : index
    %c0_1 = arith.constant 0 : index
    %0 = vector.load %arg3[%c0, %c0_0, %c0_1] : memref<1x1x256xf32, #tpu.memory_space<vmem>>, vector<1x1x256xf32>
    %c0_2 = arith.constant 0 : index
    %c0_3 = arith.constant 0 : index
    %c0_4 = arith.constant 0 : index
    %1 = vector.load %arg4[%c0_2, %c0_3, %c0_4] : memref<1x1x256xf32, #tpu.memory_space<vmem>>, vector<1x1x256xf32>
    %2 = arith.addf %0, %1 : vector<1x1x256xf32>
    %3 = tpu.iota {dimensions = array<i32: 1>} : vector<1x1x256xi32>
    %4 = tpu.iota {dimensions = array<i32: 2>} : vector<1x1x256xi32>
    %c1_i32 = arith.constant 1 : i32
    %5 = arith.muli %arg1, %c1_i32 : i32
    %6 = arith.addi %5, %arg0 : i32
    %c1_i32_5 = arith.constant 1 : i32
    %7 = arith.muli %6, %c1_i32_5 : i32
    %8 = vector.broadcast %7 : i32 to vector<1x1x256xi32>
    %9 = arith.addi %8, %3 : vector<1x1x256xi32>
    %c256_i32 = arith.constant 256 : i32
    %10 = vector.broadcast %c256_i32 : i32 to vector<1x1x256xi32>
    %11 = arith.muli %9, %10 : vector<1x1x256xi32>
    %12 = arith.addi %11, %4 : vector<1x1x256xi32>
    %c0_6 = arith.constant 0 : index
    %13 = memref.load %arg2[%c0_6] : memref<1xi32, #tpu.memory_space<smem>>
    %c-1640531527_i32 = arith.constant -1640531527 : i32
    %14 = arith.muli %13, %c-1640531527_i32 : i32
    %15 = vector.broadcast %14 : i32 to vector<1x1x256xi32>
    %16 = arith.addi %12, %15 : vector<1x1x256xi32>
    %c16_i32 = arith.constant 16 : i32
    %17 = vector.broadcast %c16_i32 : i32 to vector<1x1x256xi32>
    %18 = arith.shrui %16, %17 : vector<1x1x256xi32>
    %19 = arith.xori %16, %18 : vector<1x1x256xi32>
    %c2146121005_i32 = arith.constant 2146121005 : i32
    %20 = vector.broadcast %c2146121005_i32 : i32 to vector<1x1x256xi32>
    %21 = arith.muli %19, %20 : vector<1x1x256xi32>
    %c15_i32 = arith.constant 15 : i32
    %22 = vector.broadcast %c15_i32 : i32 to vector<1x1x256xi32>
    %23 = arith.shrui %21, %22 : vector<1x1x256xi32>
    %24 = arith.xori %21, %23 : vector<1x1x256xi32>
    %c-2073254261_i32 = arith.constant -2073254261 : i32
    %25 = vector.broadcast %c-2073254261_i32 : i32 to vector<1x1x256xi32>
    %26 = arith.muli %24, %25 : vector<1x1x256xi32>
    %c16_i32_7 = arith.constant 16 : i32
    %27 = vector.broadcast %c16_i32_7 : i32 to vector<1x1x256xi32>
    %28 = arith.shrui %26, %27 : vector<1x1x256xi32>
    %29 = arith.xori %26, %28 : vector<1x1x256xi32>
    %c8_i32 = arith.constant 8 : i32
    %30 = vector.broadcast %c8_i32 : i32 to vector<1x1x256xi32>
    %31 = arith.shrui %29, %30 : vector<1x1x256xi32>
    %c1677721_i32 = arith.constant 1677721 : i32
    %32 = vector.broadcast %c1677721_i32 : i32 to vector<1x1x256xi32>
    %33 = arith.cmpi sge, %31, %32 : vector<1x1x256xi32>
    %cst = arith.constant 1.11111116 : f32
    %34 = vector.broadcast %cst : f32 to vector<1x1x256xf32>
    %35 = arith.mulf %2, %34 : vector<1x1x256xf32>
    %cst_8 = arith.constant 0.000000e+00 : f32
    %36 = vector.broadcast %cst_8 : f32 to vector<1x1x256xf32>
    %37 = arith.select %33, %35, %36 : vector<1x1x256xi1>, vector<1x1x256xf32>
    %c0_9 = arith.constant 0 : index
    %c0_10 = arith.constant 0 : index
    %c0_11 = arith.constant 0 : index
    %38 = vector.load %arg5[%c0_9, %c0_10, %c0_11] : memref<1x1x256xf32, #tpu.memory_space<vmem>>, vector<1x1x256xf32>
    tpu.vector_store %arg5[%c0_9, %c0_10, %c0_11], %37 {strides = array<i32>} : memref<1x1x256xf32, #tpu.memory_space<vmem>>, vector<1x1x256xf32>,
    return
  }
  func.func @transform_0(%arg0: i32, %arg1: i32, %arg2: memref<1xi32, #tpu.memory_space<smem>>) -> (i32, i32, i32) {
    %c0_i32 = arith.constant 0 : i32
    %c0_i32_0 = arith.constant 0 : i32
    return %arg1, %arg0, %c0_i32 : i32, i32, i32
  }
  func.func @transform_1(%arg0: i32, %arg1: i32, %arg2: memref<1xi32, #tpu.memory_space<smem>>) -> (i32, i32, i32) {
    %c0_i32 = arith.constant 0 : i32
    %c0_i32_0 = arith.constant 0 : i32
    %c0_i32_1 = arith.constant 0 : i32
    return %c0_i32, %arg0, %c0_i32_0 : i32, i32, i32
  }
  func.func @transform_2(%arg0: i32, %arg1: i32, %arg2: memref<1xi32, #tpu.memory_space<smem>>) -> (i32, i32, i32) {
    %c0_i32 = arith.constant 0 : i32
    %c0_i32_0 = arith.constant 0 : i32
    return %arg1, %arg0, %c0_i32 : i32, i32, i32
  }
}

</mosaic_0001>

<llo_original>
// kernel: tpu_custom_call.1
$region0: #{tpu_custom_call.1}
  #allocation0 [shape = 'u32[]', space=smem, size = 0x4, offset = 0x4, fixed_abs, tag = 'smem constant byte address 0x4 - core index']
  #allocation1 [shape = 'u32[144,128]{1,0:T(1,128)}', space=vmem, size = 0x12000, scoped, tag = 'internal scratch']
  #allocation2 [shape = 's32[1]{0}', space=sflag, size = 0x4, scoped, tag = 'scoped memory for tpu_custom_call.1']
  #allocation3 [shape = 's32[1]{0:T(128)S(6)}', space=smem, size = 0x200, scoped, tag = 'prefetched SMEM operand 0']
  %s0 = inlined_call_operand.<no memory space> [shape: s32[1], index: 0, kind: input, shape index: {}]
  %s1 = inlined_call_operand.hbm [shape: f32[2,1,256], index: 1, kind: input, shape index: {}]
  %s2 = inlined_call_operand.vmem [shape: f32[1,1,256], index: 2, kind: input, shape index: {}]
  %s3 = inlined_call_operand.hbm [shape: f32[2,1,256], index: 3, kind: output, shape index: {}]
  %s4 = sld [smem:[#allocation0]]
  $region45: #{tpu_custom_call.1} parent=0
    _
  %s6 = ssub.s32 1, %s4
  %s7 = scalar_select 0, %s6, %s4
  %8 = sst [smem:[#allocation3]] %s0
  $region1: #{tpu_custom_call.1} parent=0
    #allocation4 [shape = 'u8[2048]{0}', space=vmem, size = 0x800, scoped, tag = 'input window, operand 1']
    #allocation5 [shape = 's32[2]{0}', space=sflag, size = 0x8, scoped, tag = 'scoped memory for tpu_custom_call.1']
    #allocation6 [shape = 's32[2]{0}', space=sflag, size = 0x8, scoped, tag = 'scoped memory for tpu_custom_call.1']
    #allocation7 [shape = 'u8[2048]{0}', space=vmem, size = 0x800, scoped, tag = 'output window, operand 0']
    %9 = vsyncpa [#allocation5], 0
    %s10 = scalar_lea.sflag [#allocation5], 1
    %11 = vsyncpa %s10, 0
    %12 = vsyncpa [#allocation6], 0
    %s13 = scalar_lea.sflag [#allocation6], 1
    %14 = vsyncpa %s13, 0
    loop: start=0, step=1, limit=4
    $region2: #{tpu_custom_call.1} parent=1 // loop_pre_header
      _
    $region3: #{tpu_custom_call.1} parent=1 // loop_header
      %s16 = sphi 0, %s20
      %p17 = scmp.ge.s32.totalorder %s16, 4
      %s23 = sphi 0, %s35
      %s24 = sphi 0, %s31
      %s25 = sphi 0, %s23
      %s26 = sphi 0, %s24
      %s27 = sphi 0, %s25
      %s28 = sphi 0, %s26
      %s40 = sphi 0, %s42
      %s43 = sphi 0, %s40
      %s44 = sphi 0, %s43
      %s60 = sphi 0, %s44
      %s66 = sphi 0, %s68
      %s69 = sphi 0, %s66
      %s70 = sphi 0, %s69
      %s86 = sphi 0, %s70
      %s94 = sphi 0, %s96
      %s97 = sphi 0, %s94
      %s98 = sphi 0, %s97
      %s114 = sphi 0, %s98
    $region4: #{tpu_custom_call.1} parent=1 // loop_header_branch
      %19 = sbr.rel (%p17) target = $region8
    $region5: #{tpu_custom_call.1} parent=1 // loop_body
      %s21 = ssub.s32 %s16, 1
      %s22 = ssub.s32 %s16, 2
      %s29 = sadd.s32 1, %s24
      %p30 = scmp.ge.s32.totalorder %s29, 2
      %s31 = scalar_select %p30, 0, %s29
      %s32 = sadd.s32 1, %s23
      %s33 = scalar_select %p30, %s32, %s23
      %p34 = scmp.ge.s32.totalorder %s33, 1
      %s35 = scalar_select %p34, 0, %s33
      %s36 = ssub.s32 %s24, %s31
      %s37 = ssub.s32 %s23, %s35
      %s38 = sor.u32 %s36, %s37
      %p39 = scmp.eq.s32.totalorder %s38, 0
      %s41 = sadd.s32 %s40, 1
      %s42 = scalar_select %p39, %s40, %s41
      %p45 = pneg %p39
      %p46 = scmp.eq.s32.totalorder %s16, 1
      %p47 = por %p45, %p46
      %p48 = scmp.ne.s32.totalorder %s40, %s43
      %p49 = scmp.eq.s32.totalorder %s16, 0
      %p50 = por %p48, %p49
      %p51 = scmp.ne.s32.totalorder %s40, %s43
      %p52 = scmp.eq.s32.totalorder %s21, 1
      %p53 = por %p51, %p52
      %p54 = scmp.ne.s32.totalorder %s43, %s44
      %p55 = scmp.eq.s32.totalorder %s21, 0
      %p56 = por %p54, %p55
      %p57 = scmp.ne.s32.totalorder %s43, %s44
      %p58 = scmp.eq.s32.totalorder %s22, 1
      %p59 = por %p57, %p58
      %p61 = scmp.ne.s32.totalorder %s44, %s60
      %p62 = scmp.eq.s32.totalorder %s22, 0
      %p63 = por %p61, %p62
      %s64 = ssub.s32 %s23, %s35
      %p65 = scmp.eq.s32.totalorder %s64, 0
      %s67 = sadd.s32 %s66, 1
      %s68 = scalar_select %p65, %s66, %s67
      %p71 = pneg %p65
      %p72 = scmp.eq.s32.totalorder %s16, 1
      %p73 = por %p71, %p72
      %p74 = scmp.ne.s32.totalorder %s66, %s69
      %p75 = scmp.eq.s32.totalorder %s16, 0
      %p76 = por %p74, %p75
      %p77 = scmp.ne.s32.totalorder %s66, %s69
      %p78 = scmp.eq.s32.totalorder %s21, 1
      %p79 = por %p77, %p78
      %p80 = scmp.ne.s32.totalorder %s69, %s70
      %p81 = scmp.eq.s32.totalorder %s21, 0
      %p82 = por %p80, %p81
      %p83 = scmp.ne.s32.totalorder %s69, %s70
      %p84 = scmp.eq.s32.totalorder %s22, 1
      %p85 = por %p83, %p84
      %p87 = scmp.ne.s32.totalorder %s70, %s86
      %p88 = scmp.eq.s32.totalorder %s22, 0
      %p89 = por %p87, %p88
      %s90 = ssub.s32 %s24, %s31
      %s91 = ssub.s32 %s23, %s35
      %s92 = sor.u32 %s90, %s91
      %p93 = scmp.eq.s32.totalorder %s92, 0
      %s95 = sadd.s32 %s94, 1
      %s96 = scalar_select %p93, %s94, %s95
      %p99 = pneg %p93
      %p100 = scmp.eq.s32.totalorder %s16, 1
      %p101 = por %p99, %p100
      %p102 = scmp.ne.s32.totalorder %s94, %s97
      %p103 = scmp.eq.s32.totalorder %s16, 0
      %p104 = por %p102, %p103
      %p105 = scmp.ne.s32.totalorder %s94, %s97
      %p106 = scmp.eq.s32.totalorder %s21, 1
      %p107 = por %p105, %p106
      %p108 = scmp.ne.s32.totalorder %s97, %s98
      %p109 = scmp.eq.s32.totalorder %s21, 0
      %p110 = por %p108, %p109
      %p111 = scmp.ne.s32.totalorder %s97, %s98
      %p112 = scmp.eq.s32.totalorder %s22, 1
      %p113 = por %p111, %p112
      %p115 = scmp.ne.s32.totalorder %s98, %s114
      %p116 = scmp.eq.s32.totalorder %s22, 0
      %p117 = por %p115, %p116
      %p118 = scmp.le.s32.totalorder 1, %s16
      %p119 = scmp.lt.s32.totalorder %s16, 3
      %p120 = pnand %p118, %p119
      %p121 = pneg %p120
      // Predicated region
      $region9: #{tpu_custom_call.1} parent=5 // pred_check
        _
      $region10: #{tpu_custom_call.1} parent=5 // pred_check_branch
        %123 = sbr.rel (%p120) target = $region12
      $region11: #{tpu_custom_call.1} parent=5 // pred_region
        %s124 = ssub.s32 %s16, 1
        // Predicated region
        $region13: #{tpu_custom_call.1} parent=11 // pred_check
          %p125 = pneg %p82
        $region14: #{tpu_custom_call.1} parent=11 // pred_check_branch
          %127 = sbr.rel (%p125) target = $region16
        $region15: #{tpu_custom_call.1} parent=11 // pred_region
          %p128 = scmp.lt.s32.totalorder %s25, 0
          %s129 = scalar_select %p128, %s25, 0
          %s130 = smul.addr %s129, 2
          %s131 = scalar_lea.vmem %s2, %s130
        $region16: #{tpu_custom_call.1} parent=11 // pred_fallthru
          _
      $region12: #{tpu_custom_call.1} parent=5 // pred_fallthru
        _
      %p132 = scmp.lt.s32.totalorder %s16, 2
      // Predicated region
      $region17: #{tpu_custom_call.1} parent=5 // pred_check
        %p133 = pneg %p132
      $region18: #{tpu_custom_call.1} parent=5 // pred_check_branch
        %135 = sbr.rel (%p133) target = $region20
      $region19: #{tpu_custom_call.1} parent=5 // pred_region
        // Predicated region
        $region21: #{tpu_custom_call.1} parent=19 // pred_check
          %p136 = pneg %p50
        $region22: #{tpu_custom_call.1} parent=19 // pred_check_branch
          %138 = sbr.rel (%p136) target = $region24
        $region23: #{tpu_custom_call.1} parent=19 // pred_region
          %s139 = sand.u32 %s40, 1
          %s140 = scalar_lea.sflag [#allocation5], %s139
          %s141 = sand.u32 %s40, 1
          %s142 = smul.addr %s141, 2
          %s143 = scalar_lea.vmem [#allocation4], %s142
          %s145 = ssub.s32 32, 32
          %146 = vsyncadd %s140, %s145
          %s147 = smul.addr %s23, 2
          %s148 = smul.addr %s24, 2
          %s149 = sadd.s32 %s147, %s148
          %s150 = smul.addr %s149, 16
          %s151 = scalar_lea.hbm %s1, %s150
          %s153 = sshll.u32 %s143, 4
          %s154 = int_to_ptr.vmem [resolvable:$true] %s153
          %156 = dma.hbm_to_vmem [thread:$0]  %s151, 32, %s154, %s140
        $region24: #{tpu_custom_call.1} parent=19 // pred_fallthru
          _
      $region20: #{tpu_custom_call.1} parent=5 // pred_fallthru
        _
      %p157 = scmp.le.s32.totalorder 1, %s16
      %p158 = scmp.lt.s32.totalorder %s16, 3
      %p159 = pnand %p157, %p158
      %p160 = pneg %p159
      // Predicated region
      $region25: #{tpu_custom_call.1} parent=5 // pred_check
        _
      $region26: #{tpu_custom_call.1} parent=5 // pred_check_branch
        %162 = sbr.rel (%p159) target = $region28
      $region27: #{tpu_custom_call.1} parent=5 // pred_region
        %s163 = ssub.s32 %s16, 1
        %s164 = sand.u32 %s43, 1
        %s165 = scalar_lea.sflag [#allocation5], %s164
        %s166 = sand.u32 %s43, 1
        %s167 = smul.addr %s166, 2
        %s168 = scalar_lea.vmem [#allocation4], %s167
        // Predicated region
        $region29: #{tpu_custom_call.1} parent=27 // pred_check
          %p169 = pneg %p56
        $region30: #{tpu_custom_call.1} parent=27 // pred_check_branch
          %171 = sbr.rel (%p169) target = $region32
        $region31: #{tpu_custom_call.1} parent=27 // pred_region
          %172 = dma.done %s165, 32
        $region32: #{tpu_custom_call.1} parent=27 // pred_fallthru
          _
        %s173 = sand.u32 %s43, 1
        %s174 = scalar_lea.sflag [#allocation5], %s173
        %s175 = sand.u32 %s43, 1
        %s176 = smul.addr %s175, 2
        %s177 = scalar_lea.vmem [#allocation4], %s176
        %p178 = pneg %p56
        %p179 = pneg %p53
        %p180 = scmp.lt.s32.totalorder %s25, 0
        %s181 = scalar_select %p180, %s25, 0
        %s182 = smul.addr %s181, 2
        %s183 = scalar_lea.vmem %s2, %s182
        %p184 = pneg %p82
        %p185 = pneg %p79
        %p186 = pneg %p110
        %p187 = pneg %p107
        %s188 = sand.u32 %s97, 1
        %s189 = scalar_lea.sflag [#allocation6], %s188
        %s190 = sand.u32 %s97, 1
        %s191 = smul.addr %s190, 2
        %s192 = scalar_lea.vmem [#allocation7], %s191
        %p193 = scmp.lt.s32.totalorder %s25, 0
        %s194 = scalar_select %p193, %s25, 0
        %s195 = smul.addr %s194, 2
        %s196 = scalar_lea.vmem %s2, %s195
        %v197 = vld [vmem:[%s168] sm:$0x3]
        %v198 = vld [vmem:[%s196] sm:$0x3]
        %v199 = vadd.f32 %v197, %v198
        %v200 = vlaneseq
        %v201 = vshrl.u32 %v200, 7
        %v202 = vlaneseq
        %v203 = vand.u32 %v202, 127
        %v204 = vadd.s32 %v203, 128
        %s205 = sadd.s32 %s26, %s25
        %v206 = vstv %s205
        %v207 = vadd.s32 %v206, %v201
        %v208 = vmul.u32 %v207, 256
        %v209 = vadd.s32 %v208, %v203
        %v210 = vadd.s32 %v208, %v204
        %s211 = sld [smem:[#allocation3]]
        %s212 = smul.u32 %s211, 2654435769
        %v213 = vstv %s212
        %v214 = vadd.s32 %v209, %v213
        %v215 = vadd.s32 %v210, %v213
        %v216 = vshrl.u32 %v214, 16
        %v217 = vshrl.u32 %v215, 16
        %v218 = vxor.u32 %v214, %v216
        %v219 = vxor.u32 %v215, %v217
        %v220 = vmul.u32 %v218, 2146121005
        %v221 = vmul.u32 %v219, 2146121005
        %v222 = vshrl.u32 %v220, 15
        %v223 = vshrl.u32 %v221, 15
        %v224 = vxor.u32 %v220, %v222
        %v225 = vxor.u32 %v221, %v223
        %v226 = vmul.u32 %v224, 2221713035
        %v227 = vmul.u32 %v225, 2221713035
        %v228 = vshrl.u32 %v226, 16
        %v229 = vshrl.u32 %v227, 16
        %v230 = vxor.u32 %v226, %v228
        %v231 = vxor.u32 %v227, %v229
        %v232 = vshrl.u32 %v230, 8
        %v233 = vshrl.u32 %v231, 8
        %vm234 = vcmp.ge.s32.totalorder %v232, 1677721
        %vm235 = vcmp.ge.s32.totalorder %v233, 1677721
        %v236 = vmul.f32 %v199, 1.1111112
        %v238 = vlaneseq
        %v239 = vshrl.u32 %v238, 7
        %v240 = vsub.s32 0, %v239
        %v241 = vrot.slane %v236, %v240
        %v242 = vlaneseq
        %v243 = vshrl.u32 %v242, 7
        %v244 = vsub.s32 1, %v243
        %v245 = vrot.slane %v236, %v244
        %v248 = vsel %vm234, %v241, 0.0
        %v249 = vsel %vm235, %v245, 0.0
        %v252 = vcombine.low %v248, %v249
        %v254 = vunpack.c.l.s4 1966171168
        %v255 = vunpack.c.0.s8 %v254
        %v256 = vlaneseq
        %v257 = vshrl.u32 %v256, 7
        %v258 = vsub.s32 %v255, %v257
        %v259 = vrot.slane %v252, %v258
        %v261 = vunpack.c.l.s4 1966171168
        %v262 = vunpack.c.0.s8 %v261
        %v263 = vlaneseq
        %v264 = vshrl.u32 %v263, 7
        %v265 = vsub.s32 %v262, %v264
        %v266 = vrot.slane %v259, %v265
        %v268 = vlaneseq
        %vm269 = vcmp.ge.s32.totalorder %v268, 0
        %vm270 = vcmp.lt.s32.totalorder %v268, 256
        %vm271 = vmand %vm269, %vm270
        %272 = vst.msk [vmem:[%s192] sm:$0x3] %vm271, %v266
        %s273 = sand.u32 %s97, 1
        %s274 = scalar_lea.sflag [#allocation6], %s273
        %s275 = sand.u32 %s97, 1
        %s276 = smul.addr %s275, 2
        %s277 = scalar_lea.vmem [#allocation7], %s276
        // Predicated region
        $region33: #{tpu_custom_call.1} parent=27 // pred_check
          %p278 = pneg %p107
        $region34: #{tpu_custom_call.1} parent=27 // pred_check_branch
          %280 = sbr.rel (%p278) target = $region36
        $region35: #{tpu_custom_call.1} parent=27 // pred_region
          %s282 = ssub.s32 32, 32
          %283 = vsyncadd %s274, %s282
          %s284 = smul.addr %s25, 2
          %s285 = smul.addr %s26, 2
          %s286 = sadd.s32 %s284, %s285
          %s287 = smul.addr %s286, 16
          %s288 = scalar_lea.hbm %s3, %s287
          %s290 = sshll.u32 %s277, 4
          %s291 = int_to_ptr.vmem [resolvable:$true] %s290
          %293 = dma.vmem_to_hbm [thread:$0]  %s291, 32, %s288, %s274
        $region36: #{tpu_custom_call.1} parent=27 // pred_fallthru
          _
      $region28: #{tpu_custom_call.1} parent=5 // pred_fallthru
        _
      %p294 = scmp.le.s32.totalorder 2, %s16
      // Predicated region
      $region37: #{tpu_custom_call.1} parent=5 // pred_check
        %p295 = pneg %p294
      $region38: #{tpu_custom_call.1} parent=5 // pred_check_branch
        %297 = sbr.rel (%p295) target = $region40
      $region39: #{tpu_custom_call.1} parent=5 // pred_region
        %s298 = ssub.s32 %s16, 2
        // Predicated region
        $region41: #{tpu_custom_call.1} parent=39 // pred_check
          %p299 = pneg %p113
        $region42: #{tpu_custom_call.1} parent=39 // pred_check_branch
          %301 = sbr.rel (%p299) target = $region44
        $region43: #{tpu_custom_call.1} parent=39 // pred_region
          %s302 = sand.u32 %s98, 1
          %s303 = scalar_lea.sflag [#allocation6], %s302
          %s304 = sand.u32 %s98, 1
          %s305 = smul.addr %s304, 2
          %s306 = scalar_lea.vmem [#allocation7], %s305
          %307 = dma.done %s303, 32
        $region44: #{tpu_custom_call.1} parent=39 // pred_fallthru
          _
      $region40: #{tpu_custom_call.1} parent=5 // pred_fallthru
        _
    $region6: #{tpu_custom_call.1} parent=1 // loop_footer
      %s20 = sadd.s32 1, %s16
    $region7: #{tpu_custom_call.1} parent=1 // loop_footer_branch
      %15 = sbr.rel target = $region3
    $region8: #{tpu_custom_call.1} parent=1 // loop_exit
      _
    %308 = vsyncpa [#allocation5], 1
    %s309 = scalar_lea.sflag [#allocation5], 1
    %310 = vsyncpa %s309, 1
    %311 = vsyncpa [#allocation6], 1
    %s312 = scalar_lea.sflag [#allocation6], 1
    %313 = vsyncpa %s312, 1

</llo_original>
